<compile_context>
chip_gen: v5e
topology: v5e:2x2
jax: 0.10.0
libtpu: 0.0.40
codegen_flags: <defaults>
</compile_context>

<pallas_src>
import math
import jax
import jax.numpy as jnp
from jax import lax
from jax.experimental import pallas as pl
from jax.experimental.pallas import tpu as pltpu


_LANE = 128      # lane tile (last dim)
_SUBLANE = 8     # f32 sublane tile (second-to-last dim)

# Scoped-VMEM budget. 64 MiB is safe on every generation (v5e/v6e have 128 MiB
# physical, v7x has 64 MiB).  Re-derive (~48 MiB) together with TT and the
# projection tiles when tuning specifically for v7x.
_VMEM_LIMIT_BYTES = 64 * 1024 * 1024

# Whether constant-index weight BlockSpecs use single buffering
# (pipeline_mode=pl.Buffered(1)).  Falls back automatically if the installed
# JAX rejects it.
_WEIGHT_PIPELINE = {"single_buffer": True}


# ---------------------------------------------------------------------------
# Pallas kernels
# ---------------------------------------------------------------------------
def _proj_bias_kernel(x_ref, wT_ref, b_ref, o_ref):
    """One (tm, tn) tile of o = x @ wT + b; bf16 operands, f32 accumulation."""
    acc = jnp.dot(x_ref[...], wT_ref[...], preferred_element_type=jnp.float32)
    o_ref[...] = (acc + b_ref[...]).astype(o_ref.dtype)


def _lstm_cell(gates, c, H):
    """PyTorch gate order i, f, g, o on a (B, 4H) f32 gate block."""
    i_g = jax.nn.sigmoid(gates[:, 0 * H:1 * H])
    f_g = jax.nn.sigmoid(gates[:, 1 * H:2 * H])
    g_g = jnp.tanh(gates[:, 2 * H:3 * H])
    o_g = jax.nn.sigmoid(gates[:, 3 * H:4 * H])
    c_new = f_g * c + i_g * g_g
    h_new = o_g * jnp.tanh(c_new)
    return h_new, c_new


def _lstm_seq_kernel(gx_ref, whhT_ref, out_ref, h_sc, c_sc):
    """One grid step == TT time steps of one LSTM layer.

    gx_ref   : (TT, B, 4H) bf16  precomputed x_t @ W_ih^T + (b_ih + b_hh)
    whhT_ref : (H, 4H)     bf16  pre-transposed hidden->gates weights
    out_ref  : (TT, B, H)  bf16  hidden states for this chunk (lane-dense slab)
    h_sc,c_sc: (B, H) f32        recurrent state, persists across grid steps
    """
    @pl.when(pl.program_id(0) == 0)
    def _():
        h_sc[...] = jnp.zeros_like(h_sc)
        c_sc[...] = jnp.zeros_like(c_sc)

    H = h_sc.shape[1]
    TT = gx_ref.shape[0]
    whh_t = whhT_ref[...]  # bf16, loaded once per chunk

    def step(s, carry):
        h, c = carry  # f32
        gates = gx_ref[s].astype(jnp.float32) + jnp.dot(
            h.astype(jnp.bfloat16), whh_t, preferred_element_type=jnp.float32)
        h_new, c_new = _lstm_cell(gates, c, H)
        out_ref[s] = h_new.astype(out_ref.dtype)
        return (h_new, c_new)

    h, c = lax.fori_loop(0, TT, step, (h_sc[...], c_sc[...]),
                         unroll=min(TT, 8))
    h_sc[...] = h
    c_sc[...] = c


def _lstm_last_fused_fc_kernel(gx_ref, whhT_ref, fcwT_ref, fcb_ref, y_ref,
                               h_sc, c_sc):
    """Last LSTM layer with the final Linear fused in (no (T,B,H) HBM slab)."""
    @pl.when(pl.program_id(0) == 0)
    def _():
        h_sc[...] = jnp.zeros_like(h_sc)
        c_sc[...] = jnp.zeros_like(c_sc)

    H = h_sc.shape[1]
    TT = gx_ref.shape[0]
    whh_t = whhT_ref[...]

    def step(s, carry):
        h, c = carry
        gates = gx_ref[s].astype(jnp.float32) + jnp.dot(
            h.astype(jnp.bfloat16), whh_t, preferred_element_type=jnp.float32)
        return _lstm_cell(gates, c, H)

    h, c = lax.fori_loop(0, TT, step, (h_sc[...], c_sc[...]),
                         unroll=min(TT, 8))
    h_sc[...] = h
    c_sc[...] = c

    @pl.when(pl.program_id(0) == pl.num_programs(0) - 1)
    def _():
        y_ref[...] = (
            jnp.dot(h.astype(jnp.bfloat16), fcwT_ref[...],
                    preferred_element_type=jnp.float32)
            + fcb_ref[...]
        ).astype(y_ref.dtype)


# ---------------------------------------------------------------------------
# Spec helpers
# ---------------------------------------------------------------------------
def _const_spec(block_shape, index_map, single_buffer):
    """BlockSpec for a constant-index (weight) block; single-buffered if possible."""
    if single_buffer:
        return pl.BlockSpec(block_shape, index_map, pipeline_mode=pl.Buffered(1))
    return pl.BlockSpec(block_shape, index_map)


def _call_with_weight_fallback(build_and_call):
    """Try single-buffered constant weight specs; fall back to default
    double-buffering if this JAX build rejects pipeline_mode / Buffered(1)."""
    if _WEIGHT_PIPELINE["single_buffer"]:
        try:
            return build_and_call(True)
        except Exception:  # noqa: BLE001 - compatibility fallback only
            _WEIGHT_PIPELINE["single_buffer"] = False
    return build_and_call(False)


def _largest_divisor(n, max_val, quantum):
    """Largest multiple of `quantum` dividing n and <= max_val (n if n<=max_val)."""
    if n <= max_val:
        return n
    t = max_val - (max_val % quantum)
    while t >= quantum:
        if n % t == 0:
            return t
        t -= quantum
    return n  # should not happen with padded shapes


def _time_block(T, max_tt=32):
    """Largest divisor of T not exceeding max_tt (prime T -> 1; pad T upstream)."""
    tt = 1
    for d in range(1, max_tt + 1):
        if T % d == 0:
            tt = d
    return tt


def _round_up(n, m):
    return ((n + m - 1) // m) * m


def _pad_axis(x, axis, target):
    pad = target - x.shape[axis]
    if pad <= 0:
        return x
    widths = [(0, 0)] * x.ndim
    widths[axis] = (0, pad)
    return jnp.pad(x, widths)


# ---------------------------------------------------------------------------
# Wrappers
# ---------------------------------------------------------------------------
def input_projection(x_2d, w_T, b_2d, out_dtype=jnp.bfloat16):
    """(M, K) @ (K, N) + b over all T*B rows, tiled grid over (rows, cols).

    For very large K one would add a K grid axis ("arbitrary") with an f32
    VMEM accumulator; K here is input_dim or padded H, so a full-K block is fine.
    """
    M, K = x_2d.shape
    N = w_T.shape[1]
    tm = _largest_divisor(M, 256, _SUBLANE)   # rows: multiple of 8
    tn = _largest_divisor(N, 512, _LANE)      # cols: multiple of 128
    return pl.pallas_call(
        _proj_bias_kernel,
        out_shape=jax.ShapeDtypeStruct((M, N), out_dtype),
        grid=(M // tm, N // tn),
        in_specs=[
            pl.BlockSpec((tm, K), lambda i, j: (i, 0)),
            pl.BlockSpec((K, tn), lambda i, j: (0, j)),
            pl.BlockSpec((1, tn), lambda i, j: (0, j)),
        ],
        out_specs=pl.BlockSpec((tm, tn), lambda i, j: (i, j)),
        compiler_params=pltpu.CompilerParams(
            dimension_semantics=("parallel", "parallel"),
            vmem_limit_bytes=_VMEM_LIMIT_BYTES),
    )(x_2d, w_T, b_2d)


def lstm_layer_seq(gx_tbg, whh_T, tt):
    """One LSTM layer over the whole sequence; returns (T, B, H) bf16 hidden seq."""
    T, B, G4 = gx_tbg.shape
    H = whh_T.shape[0]

    def build_and_call(single_buffer):
        return pl.pallas_call(
            _lstm_seq_kernel,
            out_shape=jax.ShapeDtypeStruct((T, B, H), jnp.bfloat16),
            grid_spec=pltpu.PrefetchScalarGridSpec(
                num_scalar_prefetch=0,
                grid=(T // tt,),
                in_specs=[
                    pl.BlockSpec((tt, B, G4), lambda t: (t, 0, 0)),   # gate slab
                    _const_spec((H, G4), lambda t: (0, 0), single_buffer),
                ],
                out_specs=pl.BlockSpec((tt, B, H), lambda t: (t, 0, 0)),
                scratch_shapes=[
                    pltpu.VMEM((B, H), jnp.float32),
                    pltpu.VMEM((B, H), jnp.float32),
                ],
            ),
            # Time axis is a true recurrence.  On v7x add a leading
            # batch-chunk "parallel" axis (and key the scratch reset on the
            # time-axis program_id) to split the batch across the 2 TCs.
            compiler_params=pltpu.CompilerParams(
                dimension_semantics=("arbitrary",),
                vmem_limit_bytes=_VMEM_LIMIT_BYTES),
        )(gx_tbg, whh_T)

    return _call_with_weight_fallback(build_and_call)


def lstm_last_layer_fused_fc(gx_tbg, whh_T, fc_w_T, fc_b_2d, tt):
    """Last LSTM layer + fused Linear; returns (B, O) f32."""
    T, B, G4 = gx_tbg.shape
    H = whh_T.shape[0]
    O = fc_w_T.shape[1]

    def build_and_call(single_buffer):
        return pl.pallas_call(
            _lstm_last_fused_fc_kernel,
            out_shape=jax.ShapeDtypeStruct((B, O), jnp.float32),
            grid_spec=pltpu.PrefetchScalarGridSpec(
                num_scalar_prefetch=0,
                grid=(T // tt,),
                in_specs=[
                    pl.BlockSpec((tt, B, G4), lambda t: (t, 0, 0)),
                    _const_spec((H, G4), lambda t: (0, 0), single_buffer),
                    _const_spec((H, O), lambda t: (0, 0), single_buffer),
                    _const_spec((1, O), lambda t: (0, 0), single_buffer),
                ],
                out_specs=pl.BlockSpec((B, O), lambda t: (0, 0)),  # resident out
                scratch_shapes=[
                    pltpu.VMEM((B, H), jnp.float32),
                    pltpu.VMEM((B, H), jnp.float32),
                ],
            ),
            compiler_params=pltpu.CompilerParams(
                dimension_semantics=("arbitrary",),
                vmem_limit_bytes=_VMEM_LIMIT_BYTES),
        )(gx_tbg, whh_T, fc_w_T, fc_b_2d)

    return _call_with_weight_fallback(build_and_call)


def prepare_params(params):
    """Pad H/O to lane multiples, pre-transpose, cast matmul operands to bf16.

    Padding is applied per gate block so the in-kernel gates[:, k*H:(k+1)*H]
    slicing stays lane-aligned AND picks the correct PyTorch gate (i,f,g,o).
    Zero padding is exact: padded gate pre-activations are 0, so padded c
    stays 0 and padded h stays sigmoid(0)*tanh(0) = 0.
    """
    H = params["lstm"][0]["w_hh"].shape[1]
    O = params["fc_w"].shape[0]
    Hp = _round_up(H, _LANE)
    Op = _round_up(O, _LANE)

    layers = []
    for idx, lp in enumerate(params["lstm"]):
        d_in = lp["w_ih"].shape[1]
        w_ih = _pad_axis(lp["w_ih"].reshape(4, H, d_in), 1, Hp)
        if idx > 0:  # layers > 0 consume the padded hidden sequence
            w_ih = _pad_axis(w_ih, 2, Hp)
        w_ih = w_ih.reshape(4 * Hp, -1)
        w_hh = _pad_axis(_pad_axis(lp["w_hh"].reshape(4, H, H), 1, Hp), 2, Hp)
        w_hh = w_hh.reshape(4 * Hp, Hp)
        b = _pad_axis((lp["b_ih"] + lp["b_hh"]).reshape(4, H), 1, Hp)
        layers.append({
            "wih_T": jnp.transpose(w_ih).astype(jnp.bfloat16),    # (Din, 4Hp)
            "whh_T": jnp.transpose(w_hh).astype(jnp.bfloat16),    # (Hp, 4Hp)
            "b": b.reshape(1, 4 * Hp).astype(jnp.float32),        # (1, 4Hp)
        })
    fc_w = _pad_axis(_pad_axis(params["fc_w"], 0, Op), 1, Hp)     # (Op, Hp)
    fc_b = _pad_axis(params["fc_b"], 0, Op)                       # (Op,)
    return {
        "lstm": layers,
        "fcw_T": jnp.transpose(fc_w).astype(jnp.bfloat16),        # (Hp, Op)
        "fcb": fc_b.reshape(1, Op).astype(jnp.float32),
        "H": H, "Hp": Hp, "O": O, "Op": Op,
    }


def lstm_model_forward(x_btd, params, *, time_block=None):
    """Full module forward. x_btd: (batch, seq, input_dim), batch_first."""
    B, T, Din = x_btd.shape
    p = prepare_params(params)
    Bp = _round_up(B, _SUBLANE)          # full f32 sublanes in every vreg
    Hp = p["Hp"]
    tt = time_block if time_block is not None else _time_block(T)
    assert T % tt == 0

    x = jnp.transpose(x_btd, (1, 0, 2))                  # (T, B, Din) time-major
    x = _pad_axis(x, 1, Bp).astype(jnp.bfloat16)         # (T, Bp, Din)
    x2d = x.reshape(T * Bp, Din)

    # TODO(synk): optional layer fusion — have layer l's recurrent kernel emit
    # layer l+1's gx slab in its epilogue to drop the per-layer (T,B,H) HBM
    # round trip (not implemented; separate hoisted projection kept below).
    num_layers = len(p["lstm"])
    y = None
    for layer, lp in enumerate(p["lstm"]):
        # Hoisted input projection: (T*Bp, Din_l) x (Din_l, 4Hp), tiled grid.
        gx = input_projection(x2d, lp["wih_T"], lp["b"])          # bf16
        gx = gx.reshape(T, Bp, 4 * Hp)
        if layer < num_layers - 1:
            h_seq = lstm_layer_seq(gx, lp["whh_T"], tt)           # (T, Bp, Hp) bf16
            x2d = h_seq.reshape(T * Bp, Hp)
        else:
            y = lstm_last_layer_fused_fc(gx, lp["whh_T"], p["fcw_T"], p["fcb"], tt)
    return y[:B, :p["O"]]


# ---------------------------------------------------------------------------
# Pure-JAX f32 reference (PyTorch semantics, for correctness check)
# ---------------------------------------------------------------------------
def lstm_model_reference(x_btd, params):
    x = jnp.transpose(x_btd, (1, 0, 2))  # (T, B, D)
    for lp in params["lstm"]:
        H = lp["w_hh"].shape[1]
        b = lp["b_ih"] + lp["b_hh"]

        def step(carry, x_t):
            h, c = carry
            gates = x_t @ lp["w_ih"].T + h @ lp["w_hh"].T + b
            i = jax.nn.sigmoid(gates[:, 0 * H:1 * H])
            f = jax.nn.sigmoid(gates[:, 1 * H:2 * H])
            g = jnp.tanh(gates[:, 2 * H:3 * H])
            o = jax.nn.sigmoid(gates[:, 3 * H:4 * H])
            c = f * c + i * g
            h = o * jnp.tanh(c)
            return (h, c), h

        B = x.shape[1]
        init = (jnp.zeros((B, H), jnp.float32), jnp.zeros((B, H), jnp.float32))
        _, x = lax.scan(step, init, x)
    return x[-1] @ params["fc_w"].T + params["fc_b"]


# ---------------------------------------------------------------------------
# Deterministic parameter init (PyTorch-style uniform(-1/sqrt(H), 1/sqrt(H)))
# ---------------------------------------------------------------------------
def init_params(key, input_dim, hidden_dim, num_layers, output_dim):
    params = {"lstm": []}
    std = 1.0 / math.sqrt(hidden_dim)
    for layer in range(num_layers):
        d_in = input_dim if layer == 0 else hidden_dim
        key, k1, k2, k3, k4 = jax.random.split(key, 5)
        params["lstm"].append({
            "w_ih": jax.random.uniform(k1, (4 * hidden_dim, d_in), jnp.float32, -std, std),
            "w_hh": jax.random.uniform(k2, (4 * hidden_dim, hidden_dim), jnp.float32, -std, std),
            "b_ih": jax.random.uniform(k3, (4 * hidden_dim,), jnp.float32, -std, std),
            "b_hh": jax.random.uniform(k4, (4 * hidden_dim,), jnp.float32, -std, std),
        })
    key, k1, k2 = jax.random.split(key, 3)
    params["fc_w"] = jax.random.uniform(k1, (output_dim, hidden_dim), jnp.float32, -std, std)
    params["fc_b"] = jax.random.uniform(k2, (output_dim,), jnp.float32, -std, std)
    return params


# ---------------------------------------------------------------------------
if __name__ == "__main__":
    batch, seq = 2, 8
    input_dim, hidden_dim, num_layers, output_dim = 4, 32, 2, 2

    key = jax.random.PRNGKey(0)
    key, kx = jax.random.split(key)
    x = jax.random.normal(kx, (batch, seq, input_dim), jnp.float32)

    params = init_params(key, input_dim, hidden_dim, num_layers, output_dim)

    # time_block=4 -> grid of 2 chunks, exercising state carry across grid steps.
    out = jax.block_until_ready(lstm_model_forward(x, params, time_block=4))
    ref = jax.block_until_ready(lstm_model_reference(x, params))

    assert out.shape == (batch, output_dim)
    # bf16 MXU operands + bf16 gx / hidden-sequence slabs -> relaxed tolerance
    # vs the pure-f32 reference.
    assert jnp.allclose(out, ref, atol=5e-2, rtol=5e-2), "Pallas LSTM mismatch vs reference"

    print("KERNEL_OK")
</pallas_src>

<mosaic_0001>
module attributes {stable_mosaic.version = 11 : i64} {
  func.func @_proj_bias_kernel(%arg0: i32, %arg1: i32, %arg2: memref<64x4xbf16, #tpu.memory_space<vmem>>, %arg3: memref<4x512xbf16, #tpu.memory_space<vmem>>, %arg4: memref<1x512xf32, #tpu.memory_space<vmem>>, %arg5: memref<64x512xbf16, #tpu.memory_space<vmem>>) attributes {dimension_semantics = [#tpu.dimension_semantics<parallel>, #tpu.dimension_semantics<parallel>], iteration_bounds = array<i64: 1, 1>, scalar_prefetch = 0 : i64, scratch_operands = 0 : i64, tpu.core_type = #tpu.core_type<tc>, window_params = [{transform_indices = @transform_0, window_bounds = array<i64: 64, 4>}, {transform_indices = @transform_1, window_bounds = array<i64: 4, 512>}, {transform_indices = @transform_2, window_bounds = array<i64: 1, 512>}, {transform_indices = @transform_3, window_bounds = array<i64: 64, 512>}]} {
    %c0 = arith.constant 0 : index
    %c0_0 = arith.constant 0 : index
    %0 = vector.load %arg2[%c0, %c0_0] : memref<64x4xbf16, #tpu.memory_space<vmem>>, vector<64x4xbf16>
    %c0_1 = arith.constant 0 : index
    %c0_2 = arith.constant 0 : index
    %1 = vector.load %arg3[%c0_1, %c0_2] : memref<4x512xbf16, #tpu.memory_space<vmem>>, vector<4x512xbf16>
    %cst = arith.constant dense<0.000000e+00> : vector<64x512xf32>
    %2 = tpu.matmul %0, %1, %cst {dimension_numbers = #tpu.dot_dimension_numbers<[1], [0], [0], [1], [0, 0, 1, 1], [], []>} : vector<64x4xbf16>, vector<4x512xbf16>, vector<64x512xf32> -> vector<64x512xf32>
    %c0_3 = arith.constant 0 : index
    %c0_4 = arith.constant 0 : index
    %3 = vector.load %arg4[%c0_3, %c0_4] : memref<1x512xf32, #tpu.memory_space<vmem>>, vector<1x512xf32>
    %4 = vector.broadcast %3 : vector<1x512xf32> to vector<64x512xf32>
    %5 = arith.addf %2, %4 : vector<64x512xf32>
    %6 = arith.truncf %5 : vector<64x512xf32> to vector<64x512xbf16>
    %c0_5 = arith.constant 0 : index
    %c0_6 = arith.constant 0 : index
    %7 = vector.load %arg5[%c0_5, %c0_6] : memref<64x512xbf16, #tpu.memory_space<vmem>>, vector<64x512xbf16>
    tpu.vector_store %arg5[%c0_5, %c0_6], %6 {strides = array<i32>} : memref<64x512xbf16, #tpu.memory_space<vmem>>, vector<64x512xbf16>,
    return
  }
  func.func @transform_0(%arg0: i32, %arg1: i32) -> (i32, i32) {
    %c0_i32 = arith.constant 0 : i32
    %c0_i32_0 = arith.constant 0 : i32
    return %arg0, %c0_i32 : i32, i32
  }
  func.func @transform_1(%arg0: i32, %arg1: i32) -> (i32, i32) {
    %c0_i32 = arith.constant 0 : i32
    %c0_i32_0 = arith.constant 0 : i32
    return %c0_i32, %arg1 : i32, i32
  }
  func.func @transform_2(%arg0: i32, %arg1: i32) -> (i32, i32) {
    %c0_i32 = arith.constant 0 : i32
    %c0_i32_0 = arith.constant 0 : i32
    return %c0_i32, %arg1 : i32, i32
  }
  func.func @transform_3(%arg0: i32, %arg1: i32) -> (i32, i32) {
    %c0_i32 = arith.constant 0 : i32
    return %arg0, %arg1 : i32, i32
  }
}

</mosaic_0001>

<llo_original>
// kernel: tpu_custom_call.1
$region0: #{tpu_custom_call.1}
  #allocation0 [shape = 'u32[]', space=smem, size = 0x4, offset = 0x4, fixed_abs, tag = 'smem constant byte address 0x4 - core index']
  #allocation1 [shape = 'u32[72,128]{1,0:T(1,128)}', space=vmem, size = 0x9000, scoped, tag = 'internal scratch']
  %s0 = inlined_call_operand.vmem [shape: bf16[64,4], index: 0, kind: input, shape index: {}]
  %s1 = inlined_call_operand.vmem [shape: bf16[4,512], index: 1, kind: input, shape index: {}]
  %s2 = inlined_call_operand.vmem [shape: f32[1,512], index: 2, kind: input, shape index: {}]
  %s3 = inlined_call_operand.hbm [shape: bf16[64,512], index: 3, kind: output, shape index: {}]
  %s4 = sld [smem:[#allocation0]]
  $region22: #{tpu_custom_call.1} parent=0
    _
  %s6 = ssub.s32 1, %s4
  %s7 = scalar_select 0, %s6, %s4
  $region1: #{tpu_custom_call.1} parent=0
    #allocation2 [shape = 'u8[65536]{0}', space=vmem, size = 0x10000, scoped, tag = 'output window, operand 0, single buffered']
    #allocation3 [shape = 's32[1]{0}', space=sflag, size = 0x4, scoped, tag = 'scoped memory for tpu_custom_call.1']
    %8 = vsyncpa [#allocation3], 0
    // Predicated region
    $region2: #{tpu_custom_call.1} parent=1 // pred_check
      _
    $region3: #{tpu_custom_call.1} parent=1 // pred_check_branch
      %10 = sbr.rel (0) target = $region5
    $region4: #{tpu_custom_call.1} parent=1 // pred_region
      _
    $region5: #{tpu_custom_call.1} parent=1 // pred_fallthru
      _
    // Predicated region
    $region6: #{tpu_custom_call.1} parent=1 // pred_check
      _
    $region7: #{tpu_custom_call.1} parent=1 // pred_check_branch
      %12 = sbr.rel (0) target = $region9
    $region8: #{tpu_custom_call.1} parent=1 // pred_region
      _
    $region9: #{tpu_custom_call.1} parent=1 // pred_fallthru
      _
    // Predicated region
    $region10: #{tpu_custom_call.1} parent=1 // pred_check
      _
    $region11: #{tpu_custom_call.1} parent=1 // pred_check_branch
      %14 = sbr.rel (0) target = $region13
    $region12: #{tpu_custom_call.1} parent=1 // pred_region
      _
    $region13: #{tpu_custom_call.1} parent=1 // pred_fallthru
      _
    %v16 = vld [vmem:[%s0] sm:$0xf]
    %v17 = vld [vmem:[%s0 + $0x4] sm:$0xf]
    %v18 = vld [vmem:[%s0 + $0x8] sm:$0xf]
    %v19 = vld [vmem:[%s0 + $0xc] sm:$0xf]
    %v20 = vld [vmem:[%s0 + $0x10] sm:$0xf]
    %v21 = vld [vmem:[%s0 + $0x14] sm:$0xf]
    %v22 = vld [vmem:[%s0 + $0x18] sm:$0xf]
    %v23 = vld [vmem:[%s0 + $0x1c] sm:$0xf]
    %v24 = vld [vmem:[%s1] sm:$0xff]
    %v25 = vld [vmem:[%s2] sm:$0xf]
    %v27 = vperm.slane %v25, 0
    %v28 = vperm.slane %v25, 1
    %v29 = vperm.slane %v25, 2
    %v30 = vperm.slane %v25, 3
    %v43 = vunpack.c.l.b16 %v16
    %v44 = vunpack.c.l.b16 %v17
    %v45 = vunpack.c.l.b16 %v18
    %v46 = vunpack.c.l.b16 %v19
    %v47 = vunpack.c.l.b16 %v20
    %v48 = vunpack.c.l.b16 %v21
    %v49 = vunpack.c.l.b16 %v22
    %v50 = vunpack.c.l.b16 %v23
    %v51 = vpack.c.b16 %v44, %v43
    %v52 = vpack.c.b16 %v46, %v45
    %v53 = vpack.c.b16 %v48, %v47
    %v54 = vpack.c.b16 %v50, %v49
    %56 = vst [vmem:[#allocation1] ss:$4 sm:$0xff] %v24
    %v57 = vld.sshfl [vmem:[#allocation1] sm:$0xff pattern:$0x73625140]
    %v58 = vld.sshfl [vmem:[#allocation1 + $0x8] sm:$0xff pattern:$0x73625140]
    %v59 = vld.sshfl [vmem:[#allocation1 + $0x10] sm:$0xff pattern:$0x73625140]
    %v60 = vld.sshfl [vmem:[#allocation1 + $0x18] sm:$0xff pattern:$0x73625140]
    %vm61 = vcmask 31744
    %v63 = vsel %vm61, %v51, 0
    %v66 = vsel %vm61, %v52, 0
    %v69 = vsel %vm61, %v53, 0
    %v72 = vsel %vm61, %v54, 0
    %vm74 = vcmask 1041408
    %v75 = vsel %vm74, %v57, 0
    %v77 = vsel %vm74, %v58, 0
    %v79 = vsel %vm74, %v59, 0
    %v81 = vsel %vm74, %v60, 0
    %83 = vmatpush.bf16.msra.mxu0 0
    %84 = vmatpush.bf16.msra.mxu0 0
    %85 = vmatpush.bf16.msra.mxu0 0
    %86 = vmatpush.bf16.msra.mxu0 0
    %87 = vmatpush.bf16.msra.mxu0 0
    %88 = vmatpush.bf16.msra.mxu0 0
    %89 = vmatpush.bf16.msra.mxu0 0
    %90 = vmatpush.bf16.msra.mxu0 %v75
    %91 = vmatmul.bf16.gmra.mxu0 %v63
    %v92 = vpop.f32.mrf.mxu0
    %v93 = vadd.f32 %v27, %v92
    %v94 = vpop.f32.mrf.mxu0
    %v95 = vadd.f32 %v27, %v94
    %96 = vmatmul.bf16.gmra.mxu0 %v66
    %v97 = vpop.f32.mrf.mxu0
    %v98 = vadd.f32 %v27, %v97
    %v99 = vpop.f32.mrf.mxu0
    %v100 = vadd.f32 %v27, %v99
    %101 = vmatmul.bf16.gmra.mxu0 %v69
    %v102 = vpop.f32.mrf.mxu0
    %v103 = vadd.f32 %v27, %v102
    %v104 = vpop.f32.mrf.mxu0
    %v105 = vadd.f32 %v27, %v104
    %106 = vmatmul.bf16.gmra.mxu0 %v72
    %v107 = vpop.f32.mrf.mxu0
    %v108 = vadd.f32 %v27, %v107
    %v109 = vpop.f32.mrf.mxu0
    %v110 = vadd.f32 %v27, %v109
    %111 = vdwg.mxu0
    %112 = vmatpush.bf16.msra.mxu0 0
    %113 = vmatpush.bf16.msra.mxu0 0
    %114 = vmatpush.bf16.msra.mxu0 0
    %115 = vmatpush.bf16.msra.mxu0 0
    %116 = vmatpush.bf16.msra.mxu0 0
    %117 = vmatpush.bf16.msra.mxu0 0
    %118 = vmatpush.bf16.msra.mxu0 0
    %119 = vmatpush.bf16.msra.mxu0 %v77
    %120 = vmatmul.bf16.gmra.mxu0 %v63
    %v121 = vpop.f32.mrf.mxu0
    %v122 = vadd.f32 %v28, %v121
    %v123 = vpop.f32.mrf.mxu0
    %v124 = vadd.f32 %v28, %v123
    %125 = vmatmul.bf16.gmra.mxu0 %v66
    %v126 = vpop.f32.mrf.mxu0
    %v127 = vadd.f32 %v28, %v126
    %v128 = vpop.f32.mrf.mxu0
    %v129 = vadd.f32 %v28, %v128
    %130 = vmatmul.bf16.gmra.mxu0 %v69
    %v131 = vpop.f32.mrf.mxu0
    %v132 = vadd.f32 %v28, %v131
    %v133 = vpop.f32.mrf.mxu0
    %v134 = vadd.f32 %v28, %v133
    %135 = vmatmul.bf16.gmra.mxu0 %v72
    %v136 = vpop.f32.mrf.mxu0
    %v137 = vadd.f32 %v28, %v136
    %v138 = vpop.f32.mrf.mxu0
    %v139 = vadd.f32 %v28, %v138
    %140 = vdwg.mxu0
    %141 = vmatpush.bf16.msra.mxu0 0
    %142 = vmatpush.bf16.msra.mxu0 0
    %143 = vmatpush.bf16.msra.mxu0 0
    %144 = vmatpush.bf16.msra.mxu0 0
    %145 = vmatpush.bf16.msra.mxu0 0
    %146 = vmatpush.bf16.msra.mxu0 0
    %147 = vmatpush.bf16.msra.mxu0 0
    %148 = vmatpush.bf16.msra.mxu0 %v79
    %149 = vmatmul.bf16.gmra.mxu0 %v63
    %v150 = vpop.f32.mrf.mxu0
    %v151 = vadd.f32 %v29, %v150
    %v152 = vpop.f32.mrf.mxu0
    %v153 = vadd.f32 %v29, %v152
    %154 = vmatmul.bf16.gmra.mxu0 %v66
    %v155 = vpop.f32.mrf.mxu0
    %v156 = vadd.f32 %v29, %v155
    %v157 = vpop.f32.mrf.mxu0
    %v158 = vadd.f32 %v29, %v157
    %159 = vmatmul.bf16.gmra.mxu0 %v69
    %v160 = vpop.f32.mrf.mxu0
    %v161 = vadd.f32 %v29, %v160
    %v162 = vpop.f32.mrf.mxu0
    %v163 = vadd.f32 %v29, %v162
    %164 = vmatmul.bf16.gmra.mxu0 %v72
    %v165 = vpop.f32.mrf.mxu0
    %v166 = vadd.f32 %v29, %v165
    %v167 = vpop.f32.mrf.mxu0
    %v168 = vadd.f32 %v29, %v167
    %169 = vdwg.mxu0
    %170 = vmatpush.bf16.msra.mxu0 0
    %171 = vmatpush.bf16.msra.mxu0 0
    %172 = vmatpush.bf16.msra.mxu0 0
    %173 = vmatpush.bf16.msra.mxu0 0
    %174 = vmatpush.bf16.msra.mxu0 0
    %175 = vmatpush.bf16.msra.mxu0 0
    %176 = vmatpush.bf16.msra.mxu0 0
    %177 = vmatpush.bf16.msra.mxu0 %v81
    %178 = vmatmul.bf16.gmra.mxu0 %v63
    %v179 = vpop.f32.mrf.mxu0
    %v180 = vadd.f32 %v30, %v179
    %v181 = vpop.f32.mrf.mxu0
    %v182 = vadd.f32 %v30, %v181
    %183 = vmatmul.bf16.gmra.mxu0 %v66
    %v184 = vpop.f32.mrf.mxu0
    %v185 = vadd.f32 %v30, %v184
    %v186 = vpop.f32.mrf.mxu0
    %v187 = vadd.f32 %v30, %v186
    %188 = vmatmul.bf16.gmra.mxu0 %v69
    %v189 = vpop.f32.mrf.mxu0
    %v190 = vadd.f32 %v30, %v189
    %v191 = vpop.f32.mrf.mxu0
    %v192 = vadd.f32 %v30, %v191
    %193 = vmatmul.bf16.gmra.mxu0 %v72
    %v194 = vpop.f32.mrf.mxu0
    %v195 = vadd.f32 %v30, %v194
    %v196 = vpop.f32.mrf.mxu0
    %v197 = vadd.f32 %v30, %v196
    %198 = vdwg.mxu0
    %v199 = vpack.c.bf16 %v122, %v93
    %v200 = vpack.c.bf16 %v180, %v151
    %v201 = vpack.c.bf16 %v124, %v95
    %v202 = vpack.c.bf16 %v182, %v153
    %v203 = vpack.c.bf16 %v127, %v98
    %v204 = vpack.c.bf16 %v185, %v156
    %v205 = vpack.c.bf16 %v129, %v100
    %v206 = vpack.c.bf16 %v187, %v158
    %v207 = vpack.c.bf16 %v132, %v103
    %v208 = vpack.c.bf16 %v190, %v161
    %v209 = vpack.c.bf16 %v134, %v105
    %v210 = vpack.c.bf16 %v192, %v163
    %v211 = vpack.c.bf16 %v137, %v108
    %v212 = vpack.c.bf16 %v195, %v166
    %v213 = vpack.c.bf16 %v139, %v110
    %v214 = vpack.c.bf16 %v197, %v168
    %215 = vst [vmem:[#allocation2] sm:$0xff] %v199
    %216 = vst [vmem:[#allocation2 + $0x8] sm:$0xff] %v200
    %217 = vst [vmem:[#allocation2 + $0x10] sm:$0xff] %v201
    %218 = vst [vmem:[#allocation2 + $0x18] sm:$0xff] %v202
    %219 = vst [vmem:[#allocation2 + $0x20] sm:$0xff] %v203
    %220 = vst [vmem:[#allocation2 + $0x28] sm:$0xff] %v204
    %221 = vst [vmem:[#allocation2 + $0x30] sm:$0xff] %v205
    %222 = vst [vmem:[#allocation2 + $0x38] sm:$0xff] %v206
    %223 = vst [vmem:[#allocation2 + $0x40] sm:$0xff] %v207
    %224 = vst [vmem:[#allocation2 + $0x48] sm:$0xff] %v208
    %225 = vst [vmem:[#allocation2 + $0x50] sm:$0xff] %v209
    %226 = vst [vmem:[#allocation2 + $0x58] sm:$0xff] %v210
    %227 = vst [vmem:[#allocation2 + $0x60] sm:$0xff] %v211
    %228 = vst [vmem:[#allocation2 + $0x68] sm:$0xff] %v212
    %229 = vst [vmem:[#allocation2 + $0x70] sm:$0xff] %v213
    %230 = vst [vmem:[#allocation2 + $0x78] sm:$0xff] %v214
    // Predicated region
    $region14: #{tpu_custom_call.1} parent=1 // pred_check
      _
    $region15: #{tpu_custom_call.1} parent=1 // pred_check_branch
      %232 = sbr.rel (0) target = $region17
    $region16: #{tpu_custom_call.1} parent=1 // pred_region
      %234 = vsyncadd [#allocation3], 0
      %s235 = sshll.u32 [#allocation2], 4
      %s236 = int_to_ptr.vmem [resolvable:$true] %s235
      %s237 = sshll.u32 %s3, 4
      %s238 = int_to_ptr.hbm [resolvable:$true] %s237
      %243 = dma.vmem_to_hbm [thread:$0]  %s236, 2048, %s238, [#allocation3], 256, 256, 16
    $region17: #{tpu_custom_call.1} parent=1 // pred_fallthru
      _
    // Predicated region
    $region18: #{tpu_custom_call.1} parent=1 // pred_check
      _
    $region19: #{tpu_custom_call.1} parent=1 // pred_check_branch
      %245 = sbr.rel (0) target = $region21
    $region20: #{tpu_custom_call.1} parent=1 // pred_region
      %247 = dma.done [#allocation3], 2048
    $region21: #{tpu_custom_call.1} parent=1 // pred_fallthru
      _
    %248 = vsyncpa [#allocation3], 1

</llo_original>
